<compile_context>
chip_gen: v6e
topology: v6e:2x2x1
jax: 0.10.0
libtpu: 0.0.40
codegen_flags: <defaults>
</compile_context>

<pallas_src>
import jax
import jax.numpy as jnp
import numpy as np
from jax.experimental import pallas as pl
from jax.experimental.pallas import tpu as pltpu

BN_EPS = 1e-5       # nn.BatchNorm1d default
NORM_EPS = 1e-12    # F.normalize default


def _multihead_fused_kernel(x_ref, w1_ref, gamma_ref, beta_ref, w2_ref, b2_ref,
                            wp_ref, sel_ref, selt_ref, logits_ref, z_ref):
    x = x_ref[...]                                                     # (N, Din) f32

    # ---- Fused Linear-1 across all heads (one MXU push) ----
    # b1 intentionally omitted: training-mode BN's mean subtraction cancels it.
    h = jnp.dot(x, w1_ref[...], preferred_element_type=jnp.float32)   # (N, H*hid)

    # ---- BatchNorm1d (training mode) folded to a single FMA + ReLU ----
    mean = jnp.mean(h, axis=0, keepdims=True)                          # (1, H*hid)
    var = jnp.mean((h - mean) ** 2, axis=0, keepdims=True)             # (1, H*hid)
    scale = gamma_ref[...] * jax.lax.rsqrt(var + BN_EPS)
    shift = beta_ref[...] - mean * scale
    hn = jnp.maximum(h * scale + shift, 0.0)                           # (N, H*hid)

    # ---- Fused Linear-2 (block-diagonal across heads) ----
    z = jnp.dot(hn, w2_ref[...], preferred_element_type=jnp.float32) + b2_ref[...]  # (N, H*Dout)

    # ---- Per-head F.normalize(dim=1) ----
    # Per-head sum of squares via 0/1 selector matmul (keeps lane-dense layout).
    sumsq = jnp.dot(z * z, sel_ref[...], preferred_element_type=jnp.float32)        # (N, H)
    inv = pl.reciprocal(jnp.maximum(jnp.sqrt(sumsq), NORM_EPS), approx=False)       # (N, H)
    inv_b = jnp.dot(inv, selt_ref[...], preferred_element_type=jnp.float32)         # (N, H*Dout)
    zn = z * inv_b

    # ---- Fused Prototypes (block-diagonal, bias-free) ----
    logits_ref[...] = jnp.dot(zn, wp_ref[...], preferred_element_type=jnp.float32)  # (N, H*P)
    z_ref[...] = zn


def _block_diag(blocks):
    """blocks: (H, I, O) per-head blocks -> block-diagonal (H*I, H*O)."""
    num_heads, in_dim, out_dim = blocks.shape
    eye = jnp.eye(num_heads, dtype=blocks.dtype)
    return jnp.einsum("hio,hg->higo", blocks, eye).reshape(
        num_heads * in_dim, num_heads * out_dim)


def multihead_forward(feats, params):
    """feats: (N, input_dim); params: dict of stacked per-head parameters."""
    w1, gamma, beta, w2, b2, wp = (
        params["w1"], params["gamma"], params["beta"],
        params["w2"], params["b2"], params["wp"],
    )
    num_heads, hidden_dim, input_dim = w1.shape
    output_dim = w2.shape[1]
    num_protos = wp.shape[1]
    n = feats.shape[0]

    # ---- trace-time parameter fusion / pre-transposition (done once in HBM) ----
    # W1: (H, hid, Din) -> (Din, H*hid); no .T needed inside the kernel.
    w1_cat = jnp.transpose(w1, (2, 0, 1)).reshape(input_dim, num_heads * hidden_dim)
    gamma_cat = gamma.reshape(1, num_heads * hidden_dim)
    beta_cat = beta.reshape(1, num_heads * hidden_dim)
    # W2: (H, Dout, hid) -> per-head (hid, Dout) blocks -> block-diag (H*hid, H*Dout)
    w2_bd = _block_diag(jnp.transpose(w2, (0, 2, 1)))
    b2_cat = b2.reshape(1, num_heads * output_dim)
    # Wp: (H, P, Dout) -> per-head (Dout, P) blocks -> block-diag (H*Dout, H*P)
    wp_bd = _block_diag(jnp.transpose(wp, (0, 2, 1)))
    # Head-membership selector (H*Dout, H) and its transpose, for per-head norms.
    sel = jnp.repeat(jnp.eye(num_heads, dtype=jnp.float32), output_dim, axis=0)
    selt = jnp.transpose(sel)

    ins = (feats.astype(jnp.float32), w1_cat, gamma_cat, beta_cat,
           w2_bd, b2_cat, wp_bd, sel, selt)

    def full2d(a):
        return pl.BlockSpec(a.shape, lambda i: (0, 0))

    logits_flat, z_flat = pl.pallas_call(
        _multihead_fused_kernel,
        grid=(1,),
        in_specs=[full2d(a) for a in ins],
        out_specs=[
            pl.BlockSpec((n, num_heads * num_protos), lambda i: (0, 0)),
            pl.BlockSpec((n, num_heads * output_dim), lambda i: (0, 0)),
        ],
        out_shape=(
            jax.ShapeDtypeStruct((n, num_heads * num_protos), jnp.float32),
            jax.ShapeDtypeStruct((n, num_heads * output_dim), jnp.float32),
        ),
        compiler_params=pltpu.CompilerParams(
            dimension_semantics=("arbitrary",)),
    )(*ins)

    # Split fused output slabs back to torch layout (heads, N, ...).
    logits = logits_flat.reshape(n, num_heads, num_protos).transpose(1, 0, 2)
    z = z_flat.reshape(n, num_heads, output_dim).transpose(1, 0, 2)
    return logits, z


def init_params(key, input_dim, hidden_dim, output_dim, num_prototypes, num_heads):
    """Deterministic synthetic init (PyTorch-like uniform fan-in bounds)."""
    ks = jax.random.split(key, 6)

    def unif(k, shape, fan_in):
        bound = 1.0 / np.sqrt(fan_in)
        return jax.random.uniform(k, shape, jnp.float32, -bound, bound)

    w1 = unif(ks[0], (num_heads, hidden_dim, input_dim), input_dim)
    b1 = unif(ks[1], (num_heads, 1, hidden_dim), input_dim)
    w2 = unif(ks[2], (num_heads, output_dim, hidden_dim), hidden_dim)
    b2 = unif(ks[3], (num_heads, 1, output_dim), hidden_dim)
    wp = unif(ks[4], (num_heads, num_prototypes, output_dim), output_dim)
    # normalize_prototypes(): row-wise L2 normalization of the prototype weights
    wp = wp / jnp.maximum(
        jnp.sqrt(jnp.sum(wp * wp, axis=-1, keepdims=True)), NORM_EPS)
    gamma = jnp.ones((num_heads, 1, hidden_dim), jnp.float32)   # BN weight init
    beta = jnp.zeros((num_heads, 1, hidden_dim), jnp.float32)   # BN bias init
    return dict(w1=w1, b1=b1, gamma=gamma, beta=beta, w2=w2, b2=b2, wp=wp)


def reference_forward(feats, p):
    """Pure-JAX reference (mirrors the PyTorch module in training mode).

    Note: it DOES add the Linear-1 bias b1 (as torch does); the kernel omits it
    because training-mode BatchNorm cancels it exactly -- the comparison below
    checks that equivalence numerically.
    """
    logits_list, z_list = [], []
    for h in range(p["w1"].shape[0]):
        x = feats @ p["w1"][h].T + p["b1"][h]
        mean = jnp.mean(x, axis=0, keepdims=True)
        var = jnp.mean((x - mean) ** 2, axis=0, keepdims=True)
        x = (x - mean) / jnp.sqrt(var + BN_EPS) * p["gamma"][h] + p["beta"][h]
        x = jnp.maximum(x, 0.0)
        z = x @ p["w2"][h].T + p["b2"][h]
        z = z / jnp.maximum(jnp.sqrt(jnp.sum(z * z, axis=1, keepdims=True)), NORM_EPS)
        logits_list.append(z @ p["wp"][h].T)
        z_list.append(z)
    return jnp.stack(logits_list), jnp.stack(z_list)


if __name__ == "__main__":
    # Small shapes consistent with the module: feats (N, input_dim)
    N, INPUT_DIM, HIDDEN_DIM, OUTPUT_DIM = 8, 32, 32, 16
    NUM_PROTOTYPES, NUM_HEADS = 8, 5

    key = jax.random.PRNGKey(0)
    k_feats, k_params = jax.random.split(key)
    feats = jax.random.normal(k_feats, (N, INPUT_DIM), jnp.float32)
    params = init_params(k_params, INPUT_DIM, HIDDEN_DIM, OUTPUT_DIM,
                         NUM_PROTOTYPES, NUM_HEADS)

    logits, z = multihead_forward(feats, params)
    jax.block_until_ready((logits, z))

    ref_logits, ref_z = reference_forward(feats, params)
    np.testing.assert_allclose(np.asarray(logits), np.asarray(ref_logits),
                               rtol=1e-5, atol=1e-5)
    np.testing.assert_allclose(np.asarray(z), np.asarray(ref_z),
                               rtol=1e-5, atol=1e-5)

    print("KERNEL_OK")
</pallas_src>

<mosaic_0001>
module attributes {stable_mosaic.version = 11 : i64} {
  func.func @_multihead_fused_kernel(%arg0: i32, %arg1: memref<8x32xf32, #tpu.memory_space<vmem>>, %arg2: memref<32x160xf32, #tpu.memory_space<vmem>>, %arg3: memref<1x160xf32, #tpu.memory_space<vmem>>, %arg4: memref<1x160xf32, #tpu.memory_space<vmem>>, %arg5: memref<160x80xf32, #tpu.memory_space<vmem>>, %arg6: memref<1x80xf32, #tpu.memory_space<vmem>>, %arg7: memref<80x40xf32, #tpu.memory_space<vmem>>, %arg8: memref<80x5xf32, #tpu.memory_space<vmem>>, %arg9: memref<5x80xf32, #tpu.memory_space<vmem>>, %arg10: memref<8x40xf32, #tpu.memory_space<vmem>>, %arg11: memref<8x80xf32, #tpu.memory_space<vmem>>) attributes {dimension_semantics = [#tpu.dimension_semantics<arbitrary>], iteration_bounds = array<i64: 1>, scalar_prefetch = 0 : i64, scratch_operands = 0 : i64, tpu.core_type = #tpu.core_type<tc>, window_params = [{pipeline_mode = #tpu.pipeline_mode<synchronous>, transform_indices = @transform_0, window_bounds = array<i64: 8, 32>}, {pipeline_mode = #tpu.pipeline_mode<synchronous>, transform_indices = @transform_1, window_bounds = array<i64: 32, 160>}, {pipeline_mode = #tpu.pipeline_mode<synchronous>, transform_indices = @transform_2, window_bounds = array<i64: 1, 160>}, {pipeline_mode = #tpu.pipeline_mode<synchronous>, transform_indices = @transform_3, window_bounds = array<i64: 1, 160>}, {pipeline_mode = #tpu.pipeline_mode<synchronous>, transform_indices = @transform_4, window_bounds = array<i64: 160, 80>}, {pipeline_mode = #tpu.pipeline_mode<synchronous>, transform_indices = @transform_5, window_bounds = array<i64: 1, 80>}, {pipeline_mode = #tpu.pipeline_mode<synchronous>, transform_indices = @transform_6, window_bounds = array<i64: 80, 40>}, {pipeline_mode = #tpu.pipeline_mode<synchronous>, transform_indices = @transform_7, window_bounds = array<i64: 80, 5>}, {pipeline_mode = #tpu.pipeline_mode<synchronous>, transform_indices = @transform_8, window_bounds = array<i64: 5, 80>}, {pipeline_mode = #tpu.pipeline_mode<synchronous>, transform_indices = @transform_9, window_bounds = array<i64: 8, 40>}, {pipeline_mode = #tpu.pipeline_mode<synchronous>, transform_indices = @transform_10, window_bounds = array<i64: 8, 80>}]} {
    %c0 = arith.constant 0 : index
    %c0_0 = arith.constant 0 : index
    %0 = vector.load %arg1[%c0, %c0_0] : memref<8x32xf32, #tpu.memory_space<vmem>>, vector<8x32xf32>
    %c0_1 = arith.constant 0 : index
    %c0_2 = arith.constant 0 : index
    %1 = vector.load %arg2[%c0_1, %c0_2] : memref<32x160xf32, #tpu.memory_space<vmem>>, vector<32x160xf32>
    %cst = arith.constant dense<0.000000e+00> : vector<8x160xf32>
    %2 = tpu.matmul %0, %1, %cst {dimension_numbers = #tpu.dot_dimension_numbers<[1], [0], [0], [1], [0, 0, 1, 1], [], []>} : vector<8x32xf32>, vector<32x160xf32>, vector<8x160xf32> -> vector<8x160xf32>
    %cst_3 = arith.constant dense<0.000000e+00> : vector<160xf32>
    %3 = vector.multi_reduction <add>, %2, %cst_3 [0] : vector<8x160xf32> to vector<160xf32>
    %4 = vector.shape_cast %3 : vector<160xf32> to vector<1x160xf32>
    %cst_4 = arith.constant 8.000000e+00 : f32
    %5 = vector.broadcast %cst_4 : f32 to vector<1x160xf32>
    %6 = arith.divf %4, %5 : vector<1x160xf32>
    %7 = vector.broadcast %6 : vector<1x160xf32> to vector<8x160xf32>
    %8 = arith.subf %2, %7 : vector<8x160xf32>
    %9 = arith.mulf %8, %8 : vector<8x160xf32>
    %cst_5 = arith.constant dense<0.000000e+00> : vector<160xf32>
    %10 = vector.multi_reduction <add>, %9, %cst_5 [0] : vector<8x160xf32> to vector<160xf32>
    %11 = vector.shape_cast %10 : vector<160xf32> to vector<1x160xf32>
    %cst_6 = arith.constant 8.000000e+00 : f32
    %12 = vector.broadcast %cst_6 : f32 to vector<1x160xf32>
    %13 = arith.divf %11, %12 : vector<1x160xf32>
    %c0_7 = arith.constant 0 : index
    %c0_8 = arith.constant 0 : index
    %14 = vector.load %arg3[%c0_7, %c0_8] : memref<1x160xf32, #tpu.memory_space<vmem>>, vector<1x160xf32>
    %cst_9 = arith.constant 9.99999974E-6 : f32
    %15 = vector.broadcast %cst_9 : f32 to vector<1x160xf32>
    %16 = arith.addf %13, %15 : vector<1x160xf32>
    %17 = math.rsqrt %16 : vector<1x160xf32>
    %18 = arith.mulf %14, %17 : vector<1x160xf32>
    %c0_10 = arith.constant 0 : index
    %c0_11 = arith.constant 0 : index
    %19 = vector.load %arg4[%c0_10, %c0_11] : memref<1x160xf32, #tpu.memory_space<vmem>>, vector<1x160xf32>
    %20 = arith.mulf %6, %18 : vector<1x160xf32>
    %21 = arith.subf %19, %20 : vector<1x160xf32>
    %22 = vector.broadcast %18 : vector<1x160xf32> to vector<8x160xf32>
    %23 = arith.mulf %2, %22 : vector<8x160xf32>
    %24 = vector.broadcast %21 : vector<1x160xf32> to vector<8x160xf32>
    %25 = arith.addf %23, %24 : vector<8x160xf32>
    %cst_12 = arith.constant 0.000000e+00 : f32
    %26 = vector.broadcast %cst_12 : f32 to vector<8x160xf32>
    %27 = arith.maximumf %25, %26 : vector<8x160xf32>
    %c0_13 = arith.constant 0 : index
    %c0_14 = arith.constant 0 : index
    %28 = vector.load %arg5[%c0_13, %c0_14] : memref<160x80xf32, #tpu.memory_space<vmem>>, vector<160x80xf32>
    %cst_15 = arith.constant dense<0.000000e+00> : vector<8x80xf32>
    %29 = tpu.matmul %27, %28, %cst_15 {dimension_numbers = #tpu.dot_dimension_numbers<[1], [0], [0], [1], [0, 0, 1, 1], [], []>} : vector<8x160xf32>, vector<160x80xf32>, vector<8x80xf32> -> vector<8x80xf32>
    %c0_16 = arith.constant 0 : index
    %c0_17 = arith.constant 0 : index
    %30 = vector.load %arg6[%c0_16, %c0_17] : memref<1x80xf32, #tpu.memory_space<vmem>>, vector<1x80xf32>
    %31 = vector.broadcast %30 : vector<1x80xf32> to vector<8x80xf32>
    %32 = arith.addf %29, %31 : vector<8x80xf32>
    %33 = arith.mulf %32, %32 : vector<8x80xf32>
    %c0_18 = arith.constant 0 : index
    %c0_19 = arith.constant 0 : index
    %34 = vector.load %arg8[%c0_18, %c0_19] : memref<80x5xf32, #tpu.memory_space<vmem>>, vector<80x5xf32>
    %cst_20 = arith.constant dense<0.000000e+00> : vector<8x5xf32>
    %35 = tpu.matmul %33, %34, %cst_20 {dimension_numbers = #tpu.dot_dimension_numbers<[1], [0], [0], [1], [0, 0, 1, 1], [], []>} : vector<8x80xf32>, vector<80x5xf32>, vector<8x5xf32> -> vector<8x5xf32>
    %36 = math.sqrt %35 : vector<8x5xf32>
    %cst_21 = arith.constant 9.99999996E-13 : f32
    %37 = vector.broadcast %cst_21 : f32 to vector<8x5xf32>
    %38 = arith.maximumf %36, %37 : vector<8x5xf32>
    %39 = tpu.reciprocal %38 : vector<8x5xf32> -> vector<8x5xf32>
    %c0_22 = arith.constant 0 : index
    %c0_23 = arith.constant 0 : index
    %40 = vector.load %arg9[%c0_22, %c0_23] : memref<5x80xf32, #tpu.memory_space<vmem>>, vector<5x80xf32>
    %cst_24 = arith.constant dense<0.000000e+00> : vector<8x80xf32>
    %41 = tpu.matmul %39, %40, %cst_24 {dimension_numbers = #tpu.dot_dimension_numbers<[1], [0], [0], [1], [0, 0, 1, 1], [], []>} : vector<8x5xf32>, vector<5x80xf32>, vector<8x80xf32> -> vector<8x80xf32>
    %42 = arith.mulf %32, %41 : vector<8x80xf32>
    %c0_25 = arith.constant 0 : index
    %c0_26 = arith.constant 0 : index
    %43 = vector.load %arg7[%c0_25, %c0_26] : memref<80x40xf32, #tpu.memory_space<vmem>>, vector<80x40xf32>
    %cst_27 = arith.constant dense<0.000000e+00> : vector<8x40xf32>
    %44 = tpu.matmul %42, %43, %cst_27 {dimension_numbers = #tpu.dot_dimension_numbers<[1], [0], [0], [1], [0, 0, 1, 1], [], []>} : vector<8x80xf32>, vector<80x40xf32>, vector<8x40xf32> -> vector<8x40xf32>
    %c0_28 = arith.constant 0 : index
    %c0_29 = arith.constant 0 : index
    %45 = vector.load %arg10[%c0_28, %c0_29] : memref<8x40xf32, #tpu.memory_space<vmem>>, vector<8x40xf32>
    tpu.vector_store %arg10[%c0_28, %c0_29], %44 {strides = array<i32>} : memref<8x40xf32, #tpu.memory_space<vmem>>, vector<8x40xf32>,
    %c0_30 = arith.constant 0 : index
    %c0_31 = arith.constant 0 : index
    %46 = vector.load %arg11[%c0_30, %c0_31] : memref<8x80xf32, #tpu.memory_space<vmem>>, vector<8x80xf32>
    tpu.vector_store %arg11[%c0_30, %c0_31], %42 {strides = array<i32>} : memref<8x80xf32, #tpu.memory_space<vmem>>, vector<8x80xf32>,
    return
  }
  func.func @transform_0(%arg0: i32) -> (i32, i32) {
    %c0_i32 = arith.constant 0 : i32
    %c0_i32_0 = arith.constant 0 : i32
    %c0_i32_1 = arith.constant 0 : i32
    return %c0_i32, %c0_i32_0 : i32, i32
  }
  func.func @transform_1(%arg0: i32) -> (i32, i32) {
    %c0_i32 = arith.constant 0 : i32
    %c0_i32_0 = arith.constant 0 : i32
    %c0_i32_1 = arith.constant 0 : i32
    return %c0_i32, %c0_i32_0 : i32, i32
  }
  func.func @transform_2(%arg0: i32) -> (i32, i32) {
    %c0_i32 = arith.constant 0 : i32
    %c0_i32_0 = arith.constant 0 : i32
    %c0_i32_1 = arith.constant 0 : i32
    return %c0_i32, %c0_i32_0 : i32, i32
  }
  func.func @transform_3(%arg0: i32) -> (i32, i32) {
    %c0_i32 = arith.constant 0 : i32
    %c0_i32_0 = arith.constant 0 : i32
    %c0_i32_1 = arith.constant 0 : i32
    return %c0_i32, %c0_i32_0 : i32, i32
  }
  func.func @transform_4(%arg0: i32) -> (i32, i32) {
    %c0_i32 = arith.constant 0 : i32
    %c0_i32_0 = arith.constant 0 : i32
    %c0_i32_1 = arith.constant 0 : i32
    return %c0_i32, %c0_i32_0 : i32, i32
  }
  func.func @transform_5(%arg0: i32) -> (i32, i32) {
    %c0_i32 = arith.constant 0 : i32
    %c0_i32_0 = arith.constant 0 : i32
    %c0_i32_1 = arith.constant 0 : i32
    return %c0_i32, %c0_i32_0 : i32, i32
  }
  func.func @transform_6(%arg0: i32) -> (i32, i32) {
    %c0_i32 = arith.constant 0 : i32
    %c0_i32_0 = arith.constant 0 : i32
    %c0_i32_1 = arith.constant 0 : i32
    return %c0_i32, %c0_i32_0 : i32, i32
  }
  func.func @transform_7(%arg0: i32) -> (i32, i32) {
    %c0_i32 = arith.constant 0 : i32
    %c0_i32_0 = arith.constant 0 : i32
    %c0_i32_1 = arith.constant 0 : i32
    return %c0_i32, %c0_i32_0 : i32, i32
  }
  func.func @transform_8(%arg0: i32) -> (i32, i32) {
    %c0_i32 = arith.constant 0 : i32
    %c0_i32_0 = arith.constant 0 : i32
    %c0_i32_1 = arith.constant 0 : i32
    return %c0_i32, %c0_i32_0 : i32, i32
  }
  func.func @transform_9(%arg0: i32) -> (i32, i32) {
    %c0_i32 = arith.constant 0 : i32
    %c0_i32_0 = arith.constant 0 : i32
    %c0_i32_1 = arith.constant 0 : i32
    return %c0_i32, %c0_i32_0 : i32, i32
  }
  func.func @transform_10(%arg0: i32) -> (i32, i32) {
    %c0_i32 = arith.constant 0 : i32
    %c0_i32_0 = arith.constant 0 : i32
    %c0_i32_1 = arith.constant 0 : i32
    return %c0_i32, %c0_i32_0 : i32, i32
  }
}

</mosaic_0001>

<llo_original>
// kernel: tpu_custom_call.1
$region0: #{tpu_custom_call.1}
  #allocation0 [shape = 'u32[]', space=smem, size = 0x4, offset = 0x4, fixed_abs, tag = 'smem constant byte address 0x4 - core index']
  #allocation1 [shape = 'u32[144,128]{1,0:T(1,128)}', space=vmem, size = 0x12000, scoped, tag = 'internal scratch']
  %s0 = inlined_call_operand.vmem [shape: f32[8,32], index: 0, kind: input, shape index: {}]
  %s1 = inlined_call_operand.hbm [shape: f32[32,160], index: 1, kind: input, shape index: {}]
  %s2 = inlined_call_operand.vmem [shape: f32[1,160], index: 2, kind: input, shape index: {}]
  %s3 = inlined_call_operand.vmem [shape: f32[1,160], index: 3, kind: input, shape index: {}]
  %s4 = inlined_call_operand.vmem [shape: f32[160,80], index: 4, kind: input, shape index: {}]
  %s5 = inlined_call_operand.vmem [shape: f32[1,80], index: 5, kind: input, shape index: {}]
  %s6 = inlined_call_operand.vmem [shape: f32[80,40], index: 6, kind: input, shape index: {}]
  %s7 = inlined_call_operand.vmem [shape: f32[80,5], index: 7, kind: input, shape index: {}]
  %s8 = inlined_call_operand.vmem [shape: f32[5,80], index: 8, kind: input, shape index: {}]
  %s9 = inlined_call_operand.hbm [shape: f32[8,40], index: 9, kind: output, shape index: {0}]
  %s10 = inlined_call_operand.hbm [shape: f32[8,80], index: 10, kind: output, shape index: {1}]
  %11 = xla_tuple %s9, %s10
  %s12 = sld [smem:[#allocation0]]
  $region58: #{tpu_custom_call.1} parent=0
    _
  %s14 = ssub.s32 1, %s12
  %s15 = scalar_select 0, %s14, %s12
  $region1: #{tpu_custom_call.1} parent=0
    #allocation2 [shape = 'u8[32768]{0}', space=vmem, size = 0x8000, scoped, tag = 'input window, operand 1, single buffered']
    #allocation3 [shape = 's32[1]{0}', space=sflag, size = 0x4, scoped, tag = 'scoped memory for tpu_custom_call.1']
    #allocation4 [shape = 's32[1]{0}', space=sflag, size = 0x4, scoped, tag = 'scoped memory for tpu_custom_call.1']
    #allocation5 [shape = 'u8[4096]{0}', space=vmem, size = 0x1000, scoped, tag = 'output window, operand 0, single buffered']
    #allocation6 [shape = 'u8[4096]{0}', space=vmem, size = 0x1000, scoped, tag = 'output window, operand 1, single buffered']
    #allocation7 [shape = 's32[1]{0}', space=sflag, size = 0x4, scoped, tag = 'scoped memory for tpu_custom_call.1']
    %16 = vsyncpa [#allocation3], 0
    %17 = vsyncpa [#allocation4], 0
    %18 = vsyncpa [#allocation7], 0
    // Predicated region
    $region2: #{tpu_custom_call.1} parent=1 // pred_check
      _
    $region3: #{tpu_custom_call.1} parent=1 // pred_check_branch
      %20 = sbr.rel (0) target = $region5
    $region4: #{tpu_custom_call.1} parent=1 // pred_region
      _
    $region5: #{tpu_custom_call.1} parent=1 // pred_fallthru
      _
    // Predicated region
    $region6: #{tpu_custom_call.1} parent=1 // pred_check
      _
    $region7: #{tpu_custom_call.1} parent=1 // pred_check_branch
      %22 = sbr.rel (0) target = $region9
    $region8: #{tpu_custom_call.1} parent=1 // pred_region
      %s24 = ssub.s32 1024, 1024
      %25 = vsyncadd [#allocation3], %s24
      %s26 = sshll.u32 [#allocation2], 4
      %s27 = int_to_ptr.vmem [resolvable:$true] %s26
      %32 = dma.hbm_to_vmem [thread:$0]  %s1, 1024, %s27, [#allocation3], 256, 256, 16
    $region9: #{tpu_custom_call.1} parent=1 // pred_fallthru
      _
    // Predicated region
    $region10: #{tpu_custom_call.1} parent=1 // pred_check
      _
    $region11: #{tpu_custom_call.1} parent=1 // pred_check_branch
      %34 = sbr.rel (0) target = $region13
    $region12: #{tpu_custom_call.1} parent=1 // pred_region
      _
    $region13: #{tpu_custom_call.1} parent=1 // pred_fallthru
      _
    // Predicated region
    $region14: #{tpu_custom_call.1} parent=1 // pred_check
      _
    $region15: #{tpu_custom_call.1} parent=1 // pred_check_branch
      %36 = sbr.rel (0) target = $region17
    $region16: #{tpu_custom_call.1} parent=1 // pred_region
      _
    $region17: #{tpu_custom_call.1} parent=1 // pred_fallthru
      _
    // Predicated region
    $region18: #{tpu_custom_call.1} parent=1 // pred_check
      _
    $region19: #{tpu_custom_call.1} parent=1 // pred_check_branch
      %38 = sbr.rel (0) target = $region21
    $region20: #{tpu_custom_call.1} parent=1 // pred_region
      _
    $region21: #{tpu_custom_call.1} parent=1 // pred_fallthru
      _
    // Predicated region
    $region22: #{tpu_custom_call.1} parent=1 // pred_check
      _
    $region23: #{tpu_custom_call.1} parent=1 // pred_check_branch
      %40 = sbr.rel (0) target = $region25
    $region24: #{tpu_custom_call.1} parent=1 // pred_region
      _
    $region25: #{tpu_custom_call.1} parent=1 // pred_fallthru
      _
    // Predicated region
    $region26: #{tpu_custom_call.1} parent=1 // pred_check
      _
    $region27: #{tpu_custom_call.1} parent=1 // pred_check_branch
      %42 = sbr.rel (0) target = $region29
    $region28: #{tpu_custom_call.1} parent=1 // pred_region
      _
    $region29: #{tpu_custom_call.1} parent=1 // pred_fallthru
      _
    // Predicated region
    $region30: #{tpu_custom_call.1} parent=1 // pred_check
      _
    $region31: #{tpu_custom_call.1} parent=1 // pred_check_branch
      %44 = sbr.rel (0) target = $region33
    $region32: #{tpu_custom_call.1} parent=1 // pred_region
      _
    $region33: #{tpu_custom_call.1} parent=1 // pred_fallthru
      _
    // Predicated region
    $region34: #{tpu_custom_call.1} parent=1 // pred_check
      _
    $region35: #{tpu_custom_call.1} parent=1 // pred_check_branch
      %46 = sbr.rel (0) target = $region37
    $region36: #{tpu_custom_call.1} parent=1 // pred_region
      _
    $region37: #{tpu_custom_call.1} parent=1 // pred_fallthru
      _
    // Predicated region
    $region38: #{tpu_custom_call.1} parent=1 // pred_check
      _
    $region39: #{tpu_custom_call.1} parent=1 // pred_check_branch
      %48 = sbr.rel (0) target = $region41
    $region40: #{tpu_custom_call.1} parent=1 // pred_region
      %49 = dma.done [#allocation3], 1024
    $region41: #{tpu_custom_call.1} parent=1 // pred_fallthru
      _
    %v50 = vld [vmem:[%s0] sm:$0xff]
    %v51 = vld [vmem:[#allocation2] sm:$0xff]
    %v52 = vld [vmem:[#allocation2 + $0x8] sm:$0xff]
    %v53 = vld [vmem:[#allocation2 + $0x10] sm:$0xff]
    %v54 = vld [vmem:[#allocation2 + $0x18] sm:$0xff]
    %v55 = vld [vmem:[#allocation2 + $0x20] sm:$0xff]
    %v56 = vld [vmem:[#allocation2 + $0x28] sm:$0xff]
    %v57 = vld [vmem:[#allocation2 + $0x30] sm:$0xff]
    %v58 = vld [vmem:[#allocation2 + $0x38] sm:$0xff]
    %vm59 = vcmask 261120
    %v61 = vsel %vm59, %v50, 0
    %63 = vmatprep.subr.mxu0 0.0
    %64 = vmatpush1.msra.mxu0 0.0
    %65 = vmatprep.subr.mxu0 0.0
    %66 = vmatpush1.msra.mxu0 0.0
    %67 = vmatprep.subr.mxu0 0.0
    %68 = vmatpush1.msra.mxu0 0.0
    %69 = vmatprep.subr.mxu0 0.0
    %70 = vmatpush1.msra.mxu0 0.0
    %71 = vmatprep.subr.mxu0 0.0
    %72 = vmatpush1.msra.mxu0 0.0
    %73 = vmatprep.subr.mxu0 0.0
    %74 = vmatpush1.msra.mxu0 0.0
    %75 = vmatprep.subr.mxu0 0.0
    %76 = vmatpush1.msra.mxu0 0.0
    %77 = vmatprep.subr.mxu0 0.0
    %78 = vmatpush1.msra.mxu0 0.0
    %79 = vmatprep.subr.mxu0 0.0
    %80 = vmatpush1.msra.mxu0 0.0
    %81 = vmatprep.subr.mxu0 0.0
    %82 = vmatpush1.msra.mxu0 0.0
    %83 = vmatprep.subr.mxu0 0.0
    %84 = vmatpush1.msra.mxu0 0.0
    %85 = vmatprep.subr.mxu0 0.0
    %86 = vmatpush1.msra.mxu0 0.0
    %87 = vmatprep.subr.mxu0 %v58
    %88 = vmatpush1.msra.mxu0 %v57
    %89 = vmatprep.subr.mxu0 %v56
    %90 = vmatpush1.msra.mxu0 %v55
    %91 = vmatprep.subr.mxu0 %v54
    %92 = vmatpush1.msra.mxu0 %v53
    %93 = vmatprep.subr.mxu0 %v52
    %94 = vmatpush1.msra.mxu0 %v51
    %95 = vmatprep.subr.mxu0 0.0
    %96 = vmatpush2.msra.mxu0 0.0
    %97 = vmatprep.subr.mxu0 0.0
    %98 = vmatpush2.msra.mxu0 0.0
    %99 = vmatprep.subr.mxu0 0.0
    %100 = vmatpush2.msra.mxu0 0.0
    %101 = vmatprep.subr.mxu0 0.0
    %102 = vmatpush2.msra.mxu0 0.0
    %103 = vmatprep.subr.mxu0 0.0
    %104 = vmatpush2.msra.mxu0 0.0
    %105 = vmatprep.subr.mxu0 0.0
    %106 = vmatpush2.msra.mxu0 0.0
    %107 = vmatprep.subr.mxu0 0.0
    %108 = vmatpush2.msra.mxu0 0.0
    %109 = vmatprep.subr.mxu0 0.0
    %110 = vmatpush2.msra.mxu0 0.0
    %111 = vmatprep.subr.mxu0 0.0
    %112 = vmatpush2.msra.mxu0 0.0
    %113 = vmatprep.subr.mxu0 0.0
    %114 = vmatpush2.msra.mxu0 0.0
    %115 = vmatprep.subr.mxu0 0.0
    %116 = vmatpush2.msra.mxu0 0.0
    %117 = vmatprep.subr.mxu0 0.0
    %118 = vmatpush2.msra.mxu0 0.0
    %119 = vmatprep.subr.mxu0 0.0
    %120 = vmatpush2.msra.mxu0 0.0
    %121 = vmatprep.subr.mxu0 0.0
    %122 = vmatpush2.msra.mxu0 0.0
    %123 = vmatprep.subr.mxu0 0.0
    %124 = vmatpush2.msra.mxu0 0.0
    %125 = vmatprep.subr.mxu0 0.0
    %126 = vmatpush2.msra.mxu0 0.0
    %127 = vmatprep.mubr.f32.mxu0 0.0
    %128 = vmatmul.mubr.f32.gmra.mxu0 %v61
    %v129 = vpop.f32.mrf.mxu0
    %v130 = vadd.f32 0.0, %v129
    %v131 = vpop.f32.mrf.mxu0
    %v132 = vadd.f32 0.0, %v131
    %133 = vdwg.mxu0
    %v134 = vrot.slane %v130, 4
    %v135 = vadd.f32 %v130, %v134
    %v136 = vrot.slane %v135, 2
    %v137 = vadd.f32 %v135, %v136
    %v138 = vrot.slane %v137, 1
    %v139 = vadd.f32 %v137, %v138
    %v140 = vsel %vm59, %v132, 0.0
    %v141 = vrot.slane %v140, 4
    %v142 = vadd.f32 %v140, %v141
    %v143 = vrot.slane %v142, 2
    %v144 = vadd.f32 %v142, %v143
    %v145 = vrot.slane %v144, 1
    %v146 = vadd.f32 %v144, %v145
    %v147 = vrcp.pop 8.0
    %v148 = vmul.f32 %v139, %v147
    %v149 = vmul.f32 %v146, %v147
    %v150 = vsub.f32 %v130, %v148
    %v151 = vsub.f32 %v132, %v149
    %v152 = vmul.f32 %v150, %v150
    %v153 = vmul.f32 %v151, %v151
    %v154 = vrot.slane %v152, 4
    %v155 = vadd.f32 %v152, %v154
    %v156 = vrot.slane %v155, 2
    %v157 = vadd.f32 %v155, %v156
    %v158 = vrot.slane %v157, 1
    %v159 = vadd.f32 %v157, %v158
    %v160 = vsel %vm59, %v153, 0.0
    %v161 = vrot.slane %v160, 4
    %v162 = vadd.f32 %v160, %v161
    %v163 = vrot.slane %v162, 2
    %v164 = vadd.f32 %v162, %v163
    %v165 = vrot.slane %v164, 1
    %v166 = vadd.f32 %v164, %v165
    %v167 = vmul.f32 %v159, %v147
    %v168 = vmul.f32 %v166, %v147
    %v169 = vld [vmem:[%s2] sm:$0x3]
    %v170 = vadd.f32 %v167, 1e-05
    %v171 = vadd.f32 %v168, 1e-05
    %v172 = vrsqrt.pop %v170
    %v173 = vrsqrt.pop %v171
    %v176 = vcombine.low %v172, %v173
    %v178 = vunpack.c.l.s4 1966171168
    %v179 = vunpack.c.0.s8 %v178
    %v180 = vlaneseq
    %v181 = vshrl.u32 %v180, 7
    %v182 = vsub.s32 %v179, %v181
    %v183 = vrot.slane %v176, %v182
    %v185 = vunpack.c.l.s4 1966171168
    %v186 = vunpack.c.0.s8 %v185
    %v187 = vlaneseq
    %v188 = vshrl.u32 %v187, 7
    %v189 = vsub.s32 %v186, %v188
    %v190 = vrot.slane %v183, %v189
    %v192 = vmul.f32 %v169, %v190
    %v193 = vld [vmem:[%s3] sm:$0x3]
    %v195 = vlaneseq
    %v196 = vshrl.u32 %v195, 7
    %v197 = vsub.s32 0, %v196
    %v198 = vrot.slane %v192, %v197
    %v199 = vlaneseq
    %v200 = vshrl.u32 %v199, 7
    %v201 = vsub.s32 1, %v200
    %v202 = vrot.slane %v192, %v201
    %v205 = vmul.f32 %v148, %v198
    %v206 = vmul.f32 %v149, %v202
    %v209 = vcombine.low %v205, %v206
    %v211 = vunpack.c.l.s4 1966171168
    %v212 = vunpack.c.0.s8 %v211
    %v213 = vlaneseq
    %v214 = vshrl.u32 %v213, 7
    %v215 = vsub.s32 %v212, %v214
    %v216 = vrot.slane %v209, %v215
    %v218 = vunpack.c.l.s4 1966171168
    %v219 = vunpack.c.0.s8 %v218
    %v220 = vlaneseq
    %v221 = vshrl.u32 %v220, 7
    %v222 = vsub.s32 %v219, %v221
    %v223 = vrot.slane %v216, %v222
    %v225 = vsub.f32 %v193, %v223
    %v226 = vmul.f32 %v130, %v198
    %v227 = vmul.f32 %v132, %v202
    %v229 = vlaneseq
    %v230 = vshrl.u32 %v229, 7
    %v231 = vsub.s32 0, %v230
    %v232 = vrot.slane %v225, %v231
    %v233 = vlaneseq
    %v234 = vshrl.u32 %v233, 7
    %v235 = vsub.s32 1, %v234
    %v236 = vrot.slane %v225, %v235
    %v239 = vadd.f32 %v226, %v232
    %v240 = vadd.f32 %v227, %v236
    %v241 = vmax.f32 %v239, 0.0
    %v242 = vmax.f32 %v240, 0.0
    %v243 = vld [vmem:[%s4] sm:$0xff]
    %v244 = vld [vmem:[%s4 + $0x8] sm:$0xff]
    %v245 = vld [vmem:[%s4 + $0x10] sm:$0xff]
    %v246 = vld [vmem:[%s4 + $0x18] sm:$0xff]
    %v247 = vld [vmem:[%s4 + $0x20] sm:$0xff]
    %v248 = vld [vmem:[%s4 + $0x28] sm:$0xff]
    %v249 = vld [vmem:[%s4 + $0x30] sm:$0xff]
    %v250 = vld [vmem:[%s4 + $0x38] sm:$0xff]
    %v251 = vld [vmem:[%s4 + $0x40] sm:$0xff]
    %v252 = vld [vmem:[%s4 + $0x48] sm:$0xff]
    %v253 = vld [vmem:[%s4 + $0x50] sm:$0xff]
    %v254 = vld [vmem:[%s4 + $0x58] sm:$0xff]
    %v255 = vld [vmem:[%s4 + $0x60] sm:$0xff]
    %v256 = vld [vmem:[%s4 + $0x68] sm:$0xff]
    %v257 = vld [vmem:[%s4 + $0x70] sm:$0xff]
    %v258 = vld [vmem:[%s4 + $0x78] sm:$0xff]
    %v259 = vld [vmem:[%s4 + $0x80] sm:$0xff]
    %v260 = vld [vmem:[%s4 + $0x88] sm:$0xff]
    %v261 = vld [vmem:[%s4 + $0x90] sm:$0xff]
    %v262 = vld [vmem:[%s4 + $0x98] sm:$0xff]
    %v263 = vld [vmem:[%s5] sm:$0x1]
    %v265 = vlaneseq
    %v266 = vshrl.u32 %v265, 7
    %v267 = vsub.s32 0, %v266
    %v268 = vrot.slane %v263, %v267
    %v271 = vsel %vm59, %v242, 0
    %273 = vmatprep.subr.mxu0 0.0
    %274 = vmatpush1.msra.mxu0 %v258
    %275 = vmatprep.subr.mxu0 0.0
    %276 = vmatpush1.msra.mxu0 %v257
    %277 = vmatprep.subr.mxu0 0.0
    %278 = vmatpush1.msra.mxu0 %v256
    %279 = vmatprep.subr.mxu0 0.0
    %280 = vmatpush1.msra.mxu0 %v255
    %281 = vmatprep.subr.mxu0 0.0
    %282 = vmatpush1.msra.mxu0 %v254
    %283 = vmatprep.subr.mxu0 0.0
    %284 = vmatpush1.msra.mxu0 %v253
    %285 = vmatprep.subr.mxu0 0.0
    %286 = vmatpush1.msra.mxu0 %v252
    %287 = vmatprep.subr.mxu0 0.0
    %288 = vmatpush1.msra.mxu0 %v251
    %289 = vmatprep.subr.mxu0 0.0
    %290 = vmatpush1.msra.mxu0 %v250
    %291 = vmatprep.subr.mxu0 0.0
    %292 = vmatpush1.msra.mxu0 %v249
    %293 = vmatprep.subr.mxu0 0.0
    %294 = vmatpush1.msra.mxu0 %v248
    %295 = vmatprep.subr.mxu0 0.0
    %296 = vmatpush1.msra.mxu0 %v247
    %297 = vmatprep.subr.mxu0 0.0
    %298 = vmatpush1.msra.mxu0 %v246
    %299 = vmatprep.subr.mxu0 0.0
    %300 = vmatpush1.msra.mxu0 %v245
    %301 = vmatprep.subr.mxu0 0.0
    %302 = vmatpush1.msra.mxu0 %v244
    %303 = vmatprep.subr.mxu0 0.0
    %304 = vmatpush1.msra.mxu0 %v243
    %305 = vmatprep.subr.mxu0 0.0
    %306 = vmatpush2.msra.mxu0 0.0
    %307 = vmatprep.subr.mxu0 0.0
    %308 = vmatpush2.msra.mxu0 0.0
    %309 = vmatprep.subr.mxu0 0.0
    %310 = vmatpush2.msra.mxu0 0.0
    %311 = vmatprep.subr.mxu0 0.0
    %312 = vmatpush2.msra.mxu0 0.0
    %313 = vmatprep.subr.mxu0 0.0
    %314 = vmatpush2.msra.mxu0 0.0
    %315 = vmatprep.subr.mxu0 0.0
    %316 = vmatpush2.msra.mxu0 0.0
    %317 = vmatprep.subr.mxu0 0.0
    %318 = vmatpush2.msra.mxu0 0.0
    %319 = vmatprep.subr.mxu0 0.0
    %320 = vmatpush2.msra.mxu0 0.0
    %321 = vmatprep.subr.mxu0 0.0
    %322 = vmatpush2.msra.mxu0 0.0
    %323 = vmatprep.subr.mxu0 0.0
    %324 = vmatpush2.msra.mxu0 0.0
    %325 = vmatprep.subr.mxu0 0.0
    %326 = vmatpush2.msra.mxu0 0.0
    %327 = vmatprep.subr.mxu0 0.0
    %328 = vmatpush2.msra.mxu0 0.0
    %329 = vmatprep.subr.mxu0 0.0
    %330 = vmatpush2.msra.mxu0 %v262
    %331 = vmatprep.subr.mxu0 0.0
    %332 = vmatpush2.msra.mxu0 %v261
    %333 = vmatprep.subr.mxu0 0.0
    %334 = vmatpush2.msra.mxu0 %v260
    %335 = vmatprep.subr.mxu0 0.0
    %336 = vmatpush2.msra.mxu0 %v259
    %337 = vmatprep.mubr.f32.mxu0 %v271
    %338 = vmatmul.mubr.f32.gmra.mxu0 %v241
    %v339 = vpop.f32.mrf.mxu0
    %v340 = vadd.f32 %v268, %v339
    %v341 = vpop.f32.mrf.mxu0
    %342 = vdwg.mxu0
    %v343 = vmul.f32 %v340, %v340
    %v344 = vld [vmem:[%s7] sm:$0xff]
    %v345 = vld [vmem:[%s7 + $0x8] sm:$0xff]
    %v346 = vld [vmem:[%s7 + $0x10] sm:$0xff]
    %v347 = vld [vmem:[%s7 + $0x18] sm:$0xff]
    %v348 = vld [vmem:[%s7 + $0x20] sm:$0xff]
    %v349 = vld [vmem:[%s7 + $0x28] sm:$0xff]
    %v350 = vld [vmem:[%s7 + $0x30] sm:$0xff]
    %v351 = vld [vmem:[%s7 + $0x38] sm:$0xff]
    %v352 = vld [vmem:[%s7 + $0x40] sm:$0xff]
    %v353 = vld [vmem:[%s7 + $0x48] sm:$0xff]
    %vm354 = vcmask 654336
    %v356 = vsel %vm354, %v343, 0
    %358 = vmatprep.subr.mxu0 0.0
    %359 = vmatpush1.msra.mxu0 0.0
    %360 = vmatprep.subr.mxu0 0.0
    %361 = vmatpush1.msra.mxu0 0.0
    %362 = vmatprep.subr.mxu0 0.0
    %363 = vmatpush1.msra.mxu0 0.0
    %364 = vmatprep.subr.mxu0 0.0
    %365 = vmatpush1.msra.mxu0 0.0
    %366 = vmatprep.subr.mxu0 0.0
    %367 = vmatpush1.msra.mxu0 0.0
    %368 = vmatprep.subr.mxu0 0.0
    %369 = vmatpush1.msra.mxu0 0.0
    %370 = vmatprep.subr.mxu0 0.0
    %371 = vmatpush1.msra.mxu0 %v353
    %372 = vmatprep.subr.mxu0 0.0
    %373 = vmatpush1.msra.mxu0 %v352
    %374 = vmatprep.subr.mxu0 0.0
    %375 = vmatpush1.msra.mxu0 %v351
    %376 = vmatprep.subr.mxu0 0.0
    %377 = vmatpush1.msra.mxu0 %v350
    %378 = vmatprep.subr.mxu0 0.0
    %379 = vmatpush1.msra.mxu0 %v349
    %380 = vmatprep.subr.mxu0 0.0
    %381 = vmatpush1.msra.mxu0 %v348
    %382 = vmatprep.subr.mxu0 0.0
    %383 = vmatpush1.msra.mxu0 %v347
    %384 = vmatprep.subr.mxu0 0.0
    %385 = vmatpush1.msra.mxu0 %v346
    %386 = vmatprep.subr.mxu0 0.0
    %387 = vmatpush1.msra.mxu0 %v345
    %388 = vmatprep.subr.mxu0 0.0
    %389 = vmatpush1.msra.mxu0 %v344
    %390 = vmatprep.subr.mxu0 0.0
    %391 = vmatpush2.msra.mxu0 0.0
    %392 = vmatprep.subr.mxu0 0.0
    %393 = vmatpush2.msra.mxu0 0.0
    %394 = vmatprep.subr.mxu0 0.0
    %395 = vmatpush2.msra.mxu0 0.0
    %396 = vmatprep.subr.mxu0 0.0
    %397 = vmatpush2.msra.mxu0 0.0
    %398 = vmatprep.subr.mxu0 0.0
    %399 = vmatpush2.msra.mxu0 0.0
    %400 = vmatprep.subr.mxu0 0.0
    %401 = vmatpush2.msra.mxu0 0.0
    %402 = vmatprep.subr.mxu0 0.0
    %403 = vmatpush2.msra.mxu0 0.0
    %404 = vmatprep.subr.mxu0 0.0
    %405 = vmatpush2.msra.mxu0 0.0
    %406 = vmatprep.subr.mxu0 0.0
    %407 = vmatpush2.msra.mxu0 0.0
    %408 = vmatprep.subr.mxu0 0.0
    %409 = vmatpush2.msra.mxu0 0.0
    %410 = vmatprep.subr.mxu0 0.0
    %411 = vmatpush2.msra.mxu0 0.0
    %412 = vmatprep.subr.mxu0 0.0
    %413 = vmatpush2.msra.mxu0 0.0
    %414 = vmatprep.subr.mxu0 0.0
    %415 = vmatpush2.msra.mxu0 0.0
    %416 = vmatprep.subr.mxu0 0.0
    %417 = vmatpush2.msra.mxu0 0.0
    %418 = vmatprep.subr.mxu0 0.0
    %419 = vmatpush2.msra.mxu0 0.0
    %420 = vmatprep.subr.mxu0 0.0
    %421 = vmatpush2.msra.mxu0 0.0
    %422 = vmatprep.mubr.f32.mxu0 0.0
    %423 = vmatmul.mubr.f32.gmra.mxu0 %v356
    %v424 = vpop.f32.mrf.mxu0
    %v425 = vadd.f32 0.0, %v424
    %v426 = vpop.f32.mrf.mxu0
    %427 = vdwg.mxu0
    %v428 = vrsqrt.pop %v425
    %v429 = vmul.f32 %v425, %v428
    %vm430 = vcmp.eq.f32.partialorder %v425, inf
    %v431 = vsel %vm430, %v425, %v429
    %vm432 = vcmp.eq.f32.partialorder %v425, 0.0
    %v433 = vand.u32 %v425, 2147483648
    %v434 = vsel %vm432, %v433, %v431
    %v435 = vmax.f32 %v434, 1e-12
    %v436 = vrcp.pop %v435
    %v437 = vld [vmem:[%s8] sm:$0x1f]
    %vm438 = vcmask 39936
    %v440 = vsel %vm438, %v436, 0
    %vm442 = vcmask 1044480
    %v444 = vsel %vm442, %v437, 0
    %446 = vmatprep.subr.mxu0 0.0
    %447 = vmatpush1.msra.mxu0 0.0
    %448 = vmatprep.subr.mxu0 0.0
    %449 = vmatpush1.msra.mxu0 0.0
    %450 = vmatprep.subr.mxu0 0.0
    %451 = vmatpush1.msra.mxu0 0.0
    %452 = vmatprep.subr.mxu0 0.0
    %453 = vmatpush1.msra.mxu0 0.0
    %454 = vmatprep.subr.mxu0 0.0
    %455 = vmatpush1.msra.mxu0 0.0
    %456 = vmatprep.subr.mxu0 0.0
    %457 = vmatpush1.msra.mxu0 0.0
    %458 = vmatprep.subr.mxu0 0.0
    %459 = vmatpush1.msra.mxu0 0.0
    %460 = vmatprep.subr.mxu0 0.0
    %461 = vmatpush1.msra.mxu0 0.0
    %462 = vmatprep.subr.mxu0 0.0
    %463 = vmatpush1.msra.mxu0 0.0
    %464 = vmatprep.subr.mxu0 0.0
    %465 = vmatpush1.msra.mxu0 0.0
    %466 = vmatprep.subr.mxu0 0.0
    %467 = vmatpush1.msra.mxu0 0.0
    %468 = vmatprep.subr.mxu0 0.0
    %469 = vmatpush1.msra.mxu0 0.0
    %470 = vmatprep.subr.mxu0 0.0
    %471 = vmatpush1.msra.mxu0 0.0
    %472 = vmatprep.subr.mxu0 0.0
    %473 = vmatpush1.msra.mxu0 0.0
    %474 = vmatprep.subr.mxu0 0.0
    %475 = vmatpush1.msra.mxu0 0.0
    %476 = vmatprep.subr.mxu0 0.0
    %477 = vmatpush1.msra.mxu0 %v444
    %478 = vmatprep.subr.mxu0 0.0
    %479 = vmatpush2.msra.mxu0 0.0
    %480 = vmatprep.subr.mxu0 0.0
    %481 = vmatpush2.msra.mxu0 0.0
    %482 = vmatprep.subr.mxu0 0.0
    %483 = vmatpush2.msra.mxu0 0.0
    %484 = vmatprep.subr.mxu0 0.0
    %485 = vmatpush2.msra.mxu0 0.0
    %486 = vmatprep.subr.mxu0 0.0
    %487 = vmatpush2.msra.mxu0 0.0
    %488 = vmatprep.subr.mxu0 0.0
    %489 = vmatpush2.msra.mxu0 0.0
    %490 = vmatprep.subr.mxu0 0.0
    %491 = vmatpush2.msra.mxu0 0.0
    %492 = vmatprep.subr.mxu0 0.0
    %493 = vmatpush2.msra.mxu0 0.0
    %494 = vmatprep.subr.mxu0 0.0
    %495 = vmatpush2.msra.mxu0 0.0
    %496 = vmatprep.subr.mxu0 0.0
    %497 = vmatpush2.msra.mxu0 0.0
    %498 = vmatprep.subr.mxu0 0.0
    %499 = vmatpush2.msra.mxu0 0.0
    %500 = vmatprep.subr.mxu0 0.0
    %501 = vmatpush2.msra.mxu0 0.0
    %502 = vmatprep.subr.mxu0 0.0
    %503 = vmatpush2.msra.mxu0 0.0
    %504 = vmatprep.subr.mxu0 0.0
    %505 = vmatpush2.msra.mxu0 0.0
    %506 = vmatprep.subr.mxu0 0.0
    %507 = vmatpush2.msra.mxu0 0.0
    %508 = vmatprep.subr.mxu0 0.0
    %509 = vmatpush2.msra.mxu0 0.0
    %510 = vmatprep.mubr.f32.mxu0 0.0
    %511 = vmatmul.mubr.f32.gmra.mxu0 %v440
    %v512 = vpop.f32.mrf.mxu0
    %v513 = vadd.f32 0.0, %v512
    %v514 = vpop.f32.mrf.mxu0
    %515 = vdwg.mxu0
    %v516 = vmul.f32 %v340, %v513
    %v517 = vld [vmem:[%s6] sm:$0xff]
    %v518 = vld [vmem:[%s6 + $0x8] sm:$0xff]
    %v519 = vld [vmem:[%s6 + $0x10] sm:$0xff]
    %v520 = vld [vmem:[%s6 + $0x18] sm:$0xff]
    %v521 = vld [vmem:[%s6 + $0x20] sm:$0xff]
    %v522 = vld [vmem:[%s6 + $0x28] sm:$0xff]
    %v523 = vld [vmem:[%s6 + $0x30] sm:$0xff]
    %v524 = vld [vmem:[%s6 + $0x38] sm:$0xff]
    %v525 = vld [vmem:[%s6 + $0x40] sm:$0xff]
    %v526 = vld [vmem:[%s6 + $0x48] sm:$0xff]
    %v528 = vsel %vm354, %v516, 0
    %530 = vmatprep.subr.mxu0 0.0
    %531 = vmatpush1.msra.mxu0 0.0
    %532 = vmatprep.subr.mxu0 0.0
    %533 = vmatpush1.msra.mxu0 0.0
    %534 = vmatprep.subr.mxu0 0.0
    %535 = vmatpush1.msra.mxu0 0.0
    %536 = vmatprep.subr.mxu0 0.0
    %537 = vmatpush1.msra.mxu0 0.0
    %538 = vmatprep.subr.mxu0 0.0
    %539 = vmatpush1.msra.mxu0 0.0
    %540 = vmatprep.subr.mxu0 0.0
    %541 = vmatpush1.msra.mxu0 0.0
    %542 = vmatprep.subr.mxu0 0.0
    %543 = vmatpush1.msra.mxu0 %v526
    %544 = vmatprep.subr.mxu0 0.0
    %545 = vmatpush1.msra.mxu0 %v525
    %546 = vmatprep.subr.mxu0 0.0
    %547 = vmatpush1.msra.mxu0 %v524
    %548 = vmatprep.subr.mxu0 0.0
    %549 = vmatpush1.msra.mxu0 %v523
    %550 = vmatprep.subr.mxu0 0.0
    %551 = vmatpush1.msra.mxu0 %v522
    %552 = vmatprep.subr.mxu0 0.0
    %553 = vmatpush1.msra.mxu0 %v521
    %554 = vmatprep.subr.mxu0 0.0
    %555 = vmatpush1.msra.mxu0 %v520
    %556 = vmatprep.subr.mxu0 0.0
    %557 = vmatpush1.msra.mxu0 %v519
    %558 = vmatprep.subr.mxu0 0.0
    %559 = vmatpush1.msra.mxu0 %v518
    %560 = vmatprep.subr.mxu0 0.0
    %561 = vmatpush1.msra.mxu0 %v517
    %562 = vmatprep.subr.mxu0 0.0
    %563 = vmatpush2.msra.mxu0 0.0
    %564 = vmatprep.subr.mxu0 0.0
    %565 = vmatpush2.msra.mxu0 0.0
    %566 = vmatprep.subr.mxu0 0.0
    %567 = vmatpush2.msra.mxu0 0.0
    %568 = vmatprep.subr.mxu0 0.0
    %569 = vmatpush2.msra.mxu0 0.0
    %570 = vmatprep.subr.mxu0 0.0
    %571 = vmatpush2.msra.mxu0 0.0
    %572 = vmatprep.subr.mxu0 0.0
    %573 = vmatpush2.msra.mxu0 0.0
    %574 = vmatprep.subr.mxu0 0.0
    %575 = vmatpush2.msra.mxu0 0.0
    %576 = vmatprep.subr.mxu0 0.0
    %577 = vmatpush2.msra.mxu0 0.0
    %578 = vmatprep.subr.mxu0 0.0
    %579 = vmatpush2.msra.mxu0 0.0
    %580 = vmatprep.subr.mxu0 0.0
    %581 = vmatpush2.msra.mxu0 0.0
    %582 = vmatprep.subr.mxu0 0.0
    %583 = vmatpush2.msra.mxu0 0.0
    %584 = vmatprep.subr.mxu0 0.0
    %585 = vmatpush2.msra.mxu0 0.0
    %586 = vmatprep.subr.mxu0 0.0
    %587 = vmatpush2.msra.mxu0 0.0
    %588 = vmatprep.subr.mxu0 0.0
    %589 = vmatpush2.msra.mxu0 0.0
    %590 = vmatprep.subr.mxu0 0.0
    %591 = vmatpush2.msra.mxu0 0.0
    %592 = vmatprep.subr.mxu0 0.0
    %593 = vmatpush2.msra.mxu0 0.0
    %594 = vmatprep.mubr.f32.mxu0 0.0
    %595 = vmatmul.mubr.f32.gmra.mxu0 %v528
    %v596 = vpop.f32.mrf.mxu0
    %v597 = vadd.f32 0.0, %v596
    %v598 = vpop.f32.mrf.mxu0
    %599 = vdwg.mxu0
    %vm600 = vcmask 326656
    %601 = vst.msk [vmem:[#allocation5] sm:$0xff] %vm600, %v597
    %602 = vst.msk [vmem:[#allocation6] sm:$0xff] %vm354, %v516
    // Predicated region
    $region42: #{tpu_custom_call.1} parent=1 // pred_check
      _
    $region43: #{tpu_custom_call.1} parent=1 // pred_check_branch
      %604 = sbr.rel (0) target = $region45
    $region44: #{tpu_custom_call.1} parent=1 // pred_region
      %s606 = ssub.s32 128, 128
      %607 = vsyncadd [#allocation4], %s606
      %s609 = sshll.u32 [#allocation5], 4
      %s610 = int_to_ptr.vmem [resolvable:$true] %s609
      %612 = dma.vmem_to_hbm [thread:$0]  %s610, 128, %s9, [#allocation4]
    $region45: #{tpu_custom_call.1} parent=1 // pred_fallthru
      _
    // Predicated region
    $region46: #{tpu_custom_call.1} parent=1 // pred_check
      _
    $region47: #{tpu_custom_call.1} parent=1 // pred_check_branch
      %614 = sbr.rel (0) target = $region49
    $region48: #{tpu_custom_call.1} parent=1 // pred_region
      %s616 = ssub.s32 128, 128
      %617 = vsyncadd [#allocation7], %s616
      %s619 = sshll.u32 [#allocation6], 4
      %s620 = int_to_ptr.vmem [resolvable:$true] %s619
      %622 = dma.vmem_to_hbm [thread:$0]  %s620, 128, %s10, [#allocation7]
    $region49: #{tpu_custom_call.1} parent=1 // pred_fallthru
      _
    // Predicated region
    $region50: #{tpu_custom_call.1} parent=1 // pred_check
      _
    $region51: #{tpu_custom_call.1} parent=1 // pred_check_branch
      %624 = sbr.rel (0) target = $region53
    $region52: #{tpu_custom_call.1} parent=1 // pred_region
      %625 = dma.done [#allocation4], 128
    $region53: #{tpu_custom_call.1} parent=1 // pred_fallthru
      _
    // Predicated region
    $region54: #{tpu_custom_call.1} parent=1 // pred_check
      _
    $region55: #{tpu_custom_call.1} parent=1 // pred_check_branch
      %627 = sbr.rel (0) target = $region57
    $region56: #{tpu_custom_call.1} parent=1 // pred_region
      %628 = dma.done [#allocation7], 128
    $region57: #{tpu_custom_call.1} parent=1 // pred_fallthru
      _
    %629 = vsyncpa [#allocation3], 1
    %630 = vsyncpa [#allocation4], 1
    %631 = vsyncpa [#allocation7], 1

</llo_original>
